<compile_context>
chip_gen: v5e
topology: v5e:2x2
jax: 0.10.0
libtpu: 0.0.40
codegen_flags: <defaults>
</compile_context>

<pallas_src>
import functools

import jax
import jax.numpy as jnp
from jax import lax
from jax.experimental import pallas as pl
from jax.experimental.pallas import tpu as pltpu

_LANE = 128
_SUBLANE = 8
_MAX_C_TILE = 64          # keeps (c_tile, 128) lane partials register-friendly
_STATIC_UNROLL_MAX = 32   # below this trip count use a fully static Python loop


# ----------------------------------------------------------------------------
# VMEM / tiling helpers
# ----------------------------------------------------------------------------
def _vmem_capacity_bytes():
    try:
        info = pltpu.get_tpu_info()
        for name in ("vmem_capacity_bytes", "vmem_size_bytes", "vmem_bytes"):
            cap = getattr(info, name, None)
            if cap:
                return int(cap)
    except Exception:
        pass
    return 64 << 20  # conservative default = v7x per-TensorCore VMEM


def _largest_mult8_divisor(c, cap):
    best = None
    t = _SUBLANE
    while t <= min(c, cap):
        if c % t == 0:
            best = t
        t += _SUBLANE
    return best


def _fused_c_tile(n, c, hw, itemsize, budget):
    """Channel tile for the fused single-pass kernel, or None if no tiling of
    the double-buffered (N, c_tile, HW) in+out slabs fits the VMEM budget."""
    per_c = 4 * n * hw * itemsize            # 2x double-buffered (in + out)
    if per_c <= 0:
        return None
    max_ct = budget // per_c
    if max_ct < 1:
        return None
    divs8 = [t for t in range(_SUBLANE, c, _SUBLANE) if c % t == 0]
    # Prefer a register-friendly tile (<= _MAX_C_TILE) that also yields >= 2
    # channel blocks so v7x can shard the grid across its two TensorCores.
    for t in sorted(divs8, reverse=True):
        if t <= max_ct and t <= _MAX_C_TILE:
            return t
    if c <= max_ct:
        return c                              # full-dim block is always legal
    for t in sorted(divs8, reverse=True):
        if t <= max_ct:
            return t
    return None


def _pick_hw_tile(hw, c_tile, itemsize, budget):
    """Largest multiple-of-128 divisor of hw whose (c_tile, hw_tile) block fits
    the budget; hw itself (block == full dim) when it already fits."""
    if hw % _LANE != 0 or c_tile * hw * itemsize <= budget:
        return hw
    max_t = max(_LANE, (budget // max(1, c_tile * itemsize)) // _LANE * _LANE)
    best = _LANE
    t = _LANE
    while t <= min(max_t, hw):
        if hw % t == 0:
            best = t
        t += _LANE
    return best


def _two_pass_tiles(c, hw, itemsize, block_budget):
    if hw % _LANE == 0:
        ct = None
        if c >= 2 * _SUBLANE:
            # prefer >= 2 channel blocks (v7x megacore on the stats pass)
            ct = _largest_mult8_divisor(c, min(_MAX_C_TILE, c // 2))
        if ct is None:
            ct = _largest_mult8_divisor(c, _MAX_C_TILE)
        c_tile = ct if ct is not None else c
        hw_tile = _pick_hw_tile(hw, c_tile, itemsize, block_budget)
    else:
        # hw not lane-aligned: keep the full spatial extent in one block and
        # shrink the channel tile so the block stays inside the VMEM budget.
        hw_tile = hw
        cap = max(_SUBLANE, block_budget // max(1, hw * itemsize))
        ct = _largest_mult8_divisor(c, min(_MAX_C_TILE, cap))
        c_tile = ct if ct is not None else c
        # TODO(synk): gigantic hw with no multiple-of-8 channel divisor could
        # still exceed VMEM here; a masked lane-tail grid would be needed.
    return c_tile, hw_tile


# ----------------------------------------------------------------------------
# In-kernel helpers
# ----------------------------------------------------------------------------
def _block_sums(x_ref, n_lead, c_tile, hw):
    """Per-channel (c_tile, 1) sum and sum-of-squares of x_ref[:n_lead, :, :hw].

    Accumulates register-resident (c_tile, 128) lane partials (1 load, 0 stores
    per x vreg) and does a single cross-lane (XLU) reduce at the end."""
    n_chunks = hw // _LANE
    rem = hw - n_chunks * _LANE
    s = jnp.zeros((c_tile, _LANE), jnp.float32)
    ss = jnp.zeros((c_tile, _LANE), jnp.float32)

    if n_chunks > 0:
        if n_lead * n_chunks <= _STATIC_UNROLL_MAX:
            for ni in range(n_lead):
                for k in range(n_chunks):
                    xc = x_ref[ni, :, pl.ds(k * _LANE, _LANE)].astype(jnp.float32)
                    s = s + xc
                    ss = ss + xc * xc
        else:
            def row_body(ni, carry):
                def chunk_body(k, c2):
                    s2, ss2 = c2
                    off = pl.multiple_of(k * _LANE, _LANE)
                    xc = x_ref[ni, :, pl.ds(off, _LANE)].astype(jnp.float32)
                    return (s2 + xc, ss2 + xc * xc)
                return lax.fori_loop(0, n_chunks, chunk_body, carry,
                                     unroll=min(8, n_chunks))
            s, ss = lax.fori_loop(0, n_lead, row_body, (s, ss))

    ts = jnp.zeros((c_tile, 1), jnp.float32)
    tss = jnp.zeros((c_tile, 1), jnp.float32)
    if rem > 0:
        off = n_chunks * _LANE
        if n_lead <= _STATIC_UNROLL_MAX:
            for ni in range(n_lead):
                xt = x_ref[ni, :, pl.ds(off, rem)].astype(jnp.float32)
                ts = ts + jnp.sum(xt, axis=-1, keepdims=True)
                tss = tss + jnp.sum(xt * xt, axis=-1, keepdims=True)
        else:
            def tail_body(ni, carry):
                t1, t2 = carry
                xt = x_ref[ni, :, pl.ds(off, rem)].astype(jnp.float32)
                return (t1 + jnp.sum(xt, axis=-1, keepdims=True),
                        t2 + jnp.sum(xt * xt, axis=-1, keepdims=True))
            ts, tss = lax.fori_loop(0, n_lead, tail_body, (ts, tss))

    total_s = jnp.sum(s, axis=-1, keepdims=True) + ts
    total_ss = jnp.sum(ss, axis=-1, keepdims=True) + tss
    return total_s, total_ss


def _apply_affine(x_ref, y_ref, n_lead, hw, scale, shift):
    """y = x * scale + shift, streamed in lane-aligned 128-wide chunks."""
    n_chunks = hw // _LANE
    rem = hw - n_chunks * _LANE
    out_dtype = y_ref.dtype

    if n_chunks > 0:
        if n_lead * n_chunks <= _STATIC_UNROLL_MAX:
            for ni in range(n_lead):
                for k in range(n_chunks):
                    sl = pl.ds(k * _LANE, _LANE)
                    xc = x_ref[ni, :, sl].astype(jnp.float32)
                    y_ref[ni, :, sl] = (xc * scale + shift).astype(out_dtype)
        else:
            def row_body(ni, _):
                def chunk_body(k, __):
                    off = pl.multiple_of(k * _LANE, _LANE)
                    sl = pl.ds(off, _LANE)
                    xc = x_ref[ni, :, sl].astype(jnp.float32)
                    y_ref[ni, :, sl] = (xc * scale + shift).astype(out_dtype)
                    return 0
                lax.fori_loop(0, n_chunks, chunk_body, 0,
                              unroll=min(8, n_chunks))
                return 0
            lax.fori_loop(0, n_lead, row_body, 0)

    if rem > 0:
        off = n_chunks * _LANE
        if n_lead <= _STATIC_UNROLL_MAX:
            for ni in range(n_lead):
                sl = pl.ds(off, rem)
                xt = x_ref[ni, :, sl].astype(jnp.float32)
                y_ref[ni, :, sl] = (xt * scale + shift).astype(out_dtype)
        else:
            def tail_body(ni, _):
                sl = pl.ds(off, rem)
                xt = x_ref[ni, :, sl].astype(jnp.float32)
                y_ref[ni, :, sl] = (xt * scale + shift).astype(out_dtype)
                return 0
            lax.fori_loop(0, n_lead, tail_body, 0)


def _finalize(s, ss, w, b, rm, rv, inv_numel, inv_nm1, eps, momentum):
    """Fold mean/var into per-channel scale/shift and the running-stat EMA."""
    mean = s * inv_numel
    sumvar = ss - s * mean                  # E[x^2] - E[x]^2 form (matches ref)
    bias_var = sumvar * inv_numel
    unbias_var = sumvar * inv_nm1
    inv_std = lax.rsqrt(bias_var + eps)
    scale = w * inv_std                     # y = x * scale + shift
    shift = b - mean * scale
    new_rm = (1.0 - momentum) * rm + momentum * mean
    new_rv = (1.0 - momentum) * rv + momentum * unbias_var
    return scale, shift, new_rm, new_rv


# ----------------------------------------------------------------------------
# Kernels
# ----------------------------------------------------------------------------
def _fused_kernel(x_ref, params_ref, y_ref, stats_ref,
                  *, inv_numel, inv_nm1, eps, momentum):
    n, c_tile, hw = x_ref.shape
    s, ss = _block_sums(x_ref, n, c_tile, hw)
    w = params_ref[:, 0:1]
    b = params_ref[:, 1:2]
    rm = params_ref[:, 2:3]
    rv = params_ref[:, 3:4]
    scale, shift, nrm, nrv = _finalize(s, ss, w, b, rm, rv,
                                       inv_numel, inv_nm1, eps, momentum)
    stats_ref[:, 0:1] = nrm
    stats_ref[:, 1:2] = nrv
    _apply_affine(x_ref, y_ref, n, hw, scale, shift)


def _stats_kernel(x_ref, params_ref, affine_ref, stats_ref, sum_acc, sq_acc,
                  *, inv_numel, inv_nm1, eps, momentum):
    ni = pl.program_id(1)
    hi = pl.program_id(2)

    @pl.when((ni == 0) & (hi == 0))
    def _():
        sum_acc[...] = jnp.zeros_like(sum_acc)
        sq_acc[...] = jnp.zeros_like(sq_acc)

    _, c_tile, hw_tile = x_ref.shape
    s, ss = _block_sums(x_ref, 1, c_tile, hw_tile)
    sum_acc[...] += s
    sq_acc[...] += ss

    @pl.when((ni == pl.num_programs(1) - 1) & (hi == pl.num_programs(2) - 1))
    def _():
        w = params_ref[:, 0:1]
        b = params_ref[:, 1:2]
        rm = params_ref[:, 2:3]
        rv = params_ref[:, 3:4]
        scale, shift, nrm, nrv = _finalize(sum_acc[...], sq_acc[...], w, b,
                                           rm, rv, inv_numel, inv_nm1, eps,
                                           momentum)
        affine_ref[:, 0:1] = scale
        affine_ref[:, 1:2] = shift
        stats_ref[:, 0:1] = nrm
        stats_ref[:, 1:2] = nrv


def _norm_kernel(x_ref, affine_ref, o_ref):
    scale = affine_ref[:, 0:1]
    shift = affine_ref[:, 1:2]
    _apply_affine(x_ref, o_ref, 1, x_ref.shape[2], scale, shift)


# ----------------------------------------------------------------------------
# Wrapper
# ----------------------------------------------------------------------------
def batchnorm2d_reimpl(x, weight, bias, running_mean, running_var,
                       eps=1e-5, momentum=0.1, force_two_pass=False):
    """BatchNorm2dReimpl.forward (training mode). x is NCHW.
    Returns (y_nchw, new_running_mean, new_running_var)."""
    n, c, h, w = x.shape
    hw = h * w
    numel = n * hw
    itemsize = jnp.dtype(x.dtype).itemsize

    x3 = x.reshape(n, c, hw)                                   # free view
    params = jnp.stack(
        [weight.astype(jnp.float32), bias.astype(jnp.float32),
         running_mean.astype(jnp.float32), running_var.astype(jnp.float32)],
        axis=-1)                                               # (C, 4)

    vmem_cap = _vmem_capacity_bytes()
    vmem_limit = max(32 << 20, min(vmem_cap * 3 // 4, 96 << 20))

    # numel == 1 would make the unbiased variance undefined (reference emits
    # inf); guard the divisor (documented behavioral difference).
    consts = dict(inv_numel=1.0 / float(numel),
                  inv_nm1=1.0 / float(max(numel - 1, 1)),
                  eps=float(eps), momentum=float(momentum))

    c_tile_f = None
    if not force_two_pass:
        c_tile_f = _fused_c_tile(n, c, hw, itemsize, int(vmem_limit * 0.8))

    if c_tile_f is not None:
        # ---- fused single pass: 1x HBM read + 1x HBM write ----
        x_spec = pl.BlockSpec((n, c_tile_f, hw), lambda ci: (0, ci, 0))
        p_spec = pl.BlockSpec((c_tile_f, 4), lambda ci: (ci, 0))
        s_spec = pl.BlockSpec((c_tile_f, 2), lambda ci: (ci, 0))
        y3, stats = pl.pallas_call(
            functools.partial(_fused_kernel, **consts),
            out_shape=(jax.ShapeDtypeStruct((n, c, hw), x.dtype),
                       jax.ShapeDtypeStruct((c, 2), jnp.float32)),
            grid=(c // c_tile_f,),
            in_specs=[x_spec, p_spec],
            out_specs=(x_spec, s_spec),
            compiler_params=pltpu.CompilerParams(
                dimension_semantics=("parallel",),
                vmem_limit_bytes=vmem_limit),
        )(x3, params)
    else:
        # ---- two-pass fallback: stats (reduction) + normalize (parallel) ----
        block_budget = min(vmem_limit // 5, 16 << 20)
        c_tile, hw_tile = _two_pass_tiles(c, hw, itemsize, block_budget)
        grid = (c // c_tile, n, hw // hw_tile)
        x_spec = pl.BlockSpec((1, c_tile, hw_tile),
                              lambda ci, ni, hi: (ni, ci, hi))
        p_spec = pl.BlockSpec((c_tile, 4), lambda ci, ni, hi: (ci, 0))
        v2_spec = pl.BlockSpec((c_tile, 2), lambda ci, ni, hi: (ci, 0))

        affine, stats = pl.pallas_call(
            functools.partial(_stats_kernel, **consts),
            out_shape=(jax.ShapeDtypeStruct((c, 2), jnp.float32),  # scale/shift
                       jax.ShapeDtypeStruct((c, 2), jnp.float32)), # new rm/rv
            grid=grid,
            in_specs=[x_spec, p_spec],
            out_specs=(v2_spec, v2_spec),
            scratch_shapes=[pltpu.VMEM((c_tile, 1), jnp.float32),
                            pltpu.VMEM((c_tile, 1), jnp.float32)],
            compiler_params=pltpu.CompilerParams(
                dimension_semantics=("parallel", "arbitrary", "arbitrary"),
                vmem_limit_bytes=vmem_limit),
        )(x3, params)

        y3 = pl.pallas_call(
            _norm_kernel,
            out_shape=jax.ShapeDtypeStruct((n, c, hw), x.dtype),
            grid=grid,
            in_specs=[x_spec, v2_spec],
            out_specs=x_spec,
            compiler_params=pltpu.CompilerParams(
                dimension_semantics=("parallel", "parallel", "parallel"),
                vmem_limit_bytes=vmem_limit),
        )(x3, affine)

    new_rm = stats[:, 0].astype(running_mean.dtype)
    new_rv = stats[:, 1].astype(running_var.dtype)
    return y3.reshape(n, c, h, w), new_rm, new_rv


# ----------------------------------------------------------------------------
# Pure-JAX reference (mirrors the PyTorch module) + self-test
# ----------------------------------------------------------------------------
def _reference(x, weight, bias, running_mean, running_var,
               eps=1e-5, momentum=0.1):
    n, c, h, w = x.shape
    numel = n * h * w
    x2 = jnp.transpose(x, (1, 0, 2, 3)).reshape(c, numel).astype(jnp.float32)
    s = x2.sum(1)
    ss = (x2 * x2).sum(1)
    mean = s / numel
    sumvar = ss - s * mean
    unbias_var = sumvar / (numel - 1)
    bias_var = sumvar / numel
    inv_std = 1.0 / jnp.sqrt(bias_var + eps)
    out = (x2 - mean[:, None]) * inv_std[:, None] * weight[:, None] + bias[:, None]
    y = jnp.transpose(out.reshape(c, n, h, w), (1, 0, 2, 3))
    rm = (1.0 - momentum) * running_mean + momentum * mean
    rv = (1.0 - momentum) * running_var + momentum * unbias_var
    return y, rm, rv


if __name__ == "__main__":
    key = jax.random.PRNGKey(0)
    kx, kw = jax.random.split(key)

    N, C, H, W = 2, 4, 16, 16
    x = jax.random.normal(kx, (N, C, H, W), dtype=jnp.float32)

    # deterministic parameter init mirroring reset_parameters():
    #   weight ~ U[0,1), bias = 0, running_mean = 0, running_var = 1
    weight = jax.random.uniform(kw, (C,), dtype=jnp.float32)
    bias = jnp.zeros((C,), dtype=jnp.float32)
    running_mean = jnp.zeros((C,), dtype=jnp.float32)
    running_var = jnp.ones((C,), dtype=jnp.float32)

    y_ref, rm_ref, rv_ref = _reference(x, weight, bias, running_mean,
                                       running_var)

    # fused single-pass path (auto-selected at this size)
    y, rm, rv = batchnorm2d_reimpl(x, weight, bias, running_mean, running_var)
    y, rm, rv = jax.block_until_ready((y, rm, rv))
    assert y.shape == (N, C, H, W)
    assert jnp.allclose(y, y_ref, atol=1e-5, rtol=1e-5)
    assert jnp.allclose(rm, rm_ref, atol=1e-6, rtol=1e-6)
    assert jnp.allclose(rv, rv_ref, atol=1e-6, rtol=1e-6)

    # two-pass (stats + normalize) fallback path
    y2, rm2, rv2 = batchnorm2d_reimpl(x, weight, bias, running_mean,
                                      running_var, force_two_pass=True)
    y2, rm2, rv2 = jax.block_until_ready((y2, rm2, rv2))
    assert jnp.allclose(y2, y_ref, atol=1e-5, rtol=1e-5)
    assert jnp.allclose(rm2, rm_ref, atol=1e-6, rtol=1e-6)
    assert jnp.allclose(rv2, rv_ref, atol=1e-6, rtol=1e-6)

    print("KERNEL_OK")
</pallas_src>

<mosaic_0001>
module attributes {stable_mosaic.version = 11 : i64} {
  func.func @_fused_kernel(%arg0: i32, %arg1: memref<2x4x256xf32, #tpu.memory_space<vmem>>, %arg2: memref<4x4xf32, #tpu.memory_space<vmem>>, %arg3: memref<2x4x256xf32, #tpu.memory_space<vmem>>, %arg4: memref<4x2xf32, #tpu.memory_space<vmem>>) attributes {dimension_semantics = [#tpu.dimension_semantics<parallel>], iteration_bounds = array<i64: 1>, scalar_prefetch = 0 : i64, scratch_operands = 0 : i64, tpu.core_type = #tpu.core_type<tc>, window_params = [{transform_indices = @transform_0, window_bounds = array<i64: 2, 4, 256>}, {transform_indices = @transform_1, window_bounds = array<i64: 4, 4>}, {transform_indices = @transform_2, window_bounds = array<i64: 2, 4, 256>}, {transform_indices = @transform_3, window_bounds = array<i64: 4, 2>}]} {
    %cst = arith.constant 0.000000e+00 : f32
    %0 = vector.broadcast %cst : f32 to vector<4x128xf32>
    %cst_0 = arith.constant 0.000000e+00 : f32
    %1 = vector.broadcast %cst_0 : f32 to vector<4x128xf32>
    %c0 = arith.constant 0 : index
    %c0_1 = arith.constant 0 : index
    %c0_2 = arith.constant 0 : index
    %2 = vector.load %arg1[%c0, %c0_1, %c0_2] : memref<2x4x256xf32, #tpu.memory_space<vmem>>, vector<1x4x128xf32>
    %3 = vector.shape_cast %2 : vector<1x4x128xf32> to vector<4x128xf32>
    %4 = arith.addf %0, %3 : vector<4x128xf32>
    %5 = arith.mulf %3, %3 : vector<4x128xf32>
    %6 = arith.addf %1, %5 : vector<4x128xf32>
    %c0_3 = arith.constant 0 : index
    %c0_4 = arith.constant 0 : index
    %c128 = arith.constant 128 : index
    %7 = vector.load %arg1[%c0_3, %c0_4, %c128] : memref<2x4x256xf32, #tpu.memory_space<vmem>>, vector<1x4x128xf32>
    %8 = vector.shape_cast %7 : vector<1x4x128xf32> to vector<4x128xf32>
    %9 = arith.addf %4, %8 : vector<4x128xf32>
    %10 = arith.mulf %8, %8 : vector<4x128xf32>
    %11 = arith.addf %6, %10 : vector<4x128xf32>
    %c1 = arith.constant 1 : index
    %c0_5 = arith.constant 0 : index
    %c0_6 = arith.constant 0 : index
    %12 = vector.load %arg1[%c1, %c0_5, %c0_6] : memref<2x4x256xf32, #tpu.memory_space<vmem>>, vector<1x4x128xf32>
    %13 = vector.shape_cast %12 : vector<1x4x128xf32> to vector<4x128xf32>
    %14 = arith.addf %9, %13 : vector<4x128xf32>
    %15 = arith.mulf %13, %13 : vector<4x128xf32>
    %16 = arith.addf %11, %15 : vector<4x128xf32>
    %c1_7 = arith.constant 1 : index
    %c0_8 = arith.constant 0 : index
    %c128_9 = arith.constant 128 : index
    %17 = vector.load %arg1[%c1_7, %c0_8, %c128_9] : memref<2x4x256xf32, #tpu.memory_space<vmem>>, vector<1x4x128xf32>
    %18 = vector.shape_cast %17 : vector<1x4x128xf32> to vector<4x128xf32>
    %19 = arith.addf %14, %18 : vector<4x128xf32>
    %20 = arith.mulf %18, %18 : vector<4x128xf32>
    %21 = arith.addf %16, %20 : vector<4x128xf32>
    %cst_10 = arith.constant 0.000000e+00 : f32
    %22 = vector.broadcast %cst_10 : f32 to vector<4x1xf32>
    %cst_11 = arith.constant 0.000000e+00 : f32
    %23 = vector.broadcast %cst_11 : f32 to vector<4x1xf32>
    %cst_12 = arith.constant dense<0.000000e+00> : vector<4xf32>
    %24 = vector.multi_reduction <add>, %19, %cst_12 [1] : vector<4x128xf32> to vector<4xf32>
    %25 = vector.shape_cast %24 : vector<4xf32> to vector<4x1xf32>
    %26 = arith.addf %25, %22 : vector<4x1xf32>
    %cst_13 = arith.constant dense<0.000000e+00> : vector<4xf32>
    %27 = vector.multi_reduction <add>, %21, %cst_13 [1] : vector<4x128xf32> to vector<4xf32>
    %28 = vector.shape_cast %27 : vector<4xf32> to vector<4x1xf32>
    %29 = arith.addf %28, %23 : vector<4x1xf32>
    %c0_14 = arith.constant 0 : index
    %c0_15 = arith.constant 0 : index
    %30 = vector.load %arg2[%c0_14, %c0_15] : memref<4x4xf32, #tpu.memory_space<vmem>>, vector<4x1xf32>
    %c0_16 = arith.constant 0 : index
    %c1_17 = arith.constant 1 : index
    %31 = vector.load %arg2[%c0_16, %c1_17] : memref<4x4xf32, #tpu.memory_space<vmem>>, vector<4x1xf32>
    %c0_18 = arith.constant 0 : index
    %c2 = arith.constant 2 : index
    %32 = vector.load %arg2[%c0_18, %c2] : memref<4x4xf32, #tpu.memory_space<vmem>>, vector<4x1xf32>
    %c0_19 = arith.constant 0 : index
    %c3 = arith.constant 3 : index
    %33 = vector.load %arg2[%c0_19, %c3] : memref<4x4xf32, #tpu.memory_space<vmem>>, vector<4x1xf32>
    %cst_20 = arith.constant 0.001953125 : f32
    %34 = vector.broadcast %cst_20 : f32 to vector<4x1xf32>
    %35 = arith.mulf %26, %34 : vector<4x1xf32>
    %36 = arith.mulf %26, %35 : vector<4x1xf32>
    %37 = arith.subf %29, %36 : vector<4x1xf32>
    %cst_21 = arith.constant 0.001953125 : f32
    %38 = vector.broadcast %cst_21 : f32 to vector<4x1xf32>
    %39 = arith.mulf %37, %38 : vector<4x1xf32>
    %cst_22 = arith.constant 0.00195694715 : f32
    %40 = vector.broadcast %cst_22 : f32 to vector<4x1xf32>
    %41 = arith.mulf %37, %40 : vector<4x1xf32>
    %cst_23 = arith.constant 9.99999974E-6 : f32
    %42 = vector.broadcast %cst_23 : f32 to vector<4x1xf32>
    %43 = arith.addf %39, %42 : vector<4x1xf32>
    %44 = math.rsqrt %43 : vector<4x1xf32>
    %45 = arith.mulf %30, %44 : vector<4x1xf32>
    %46 = arith.mulf %35, %45 : vector<4x1xf32>
    %47 = arith.subf %31, %46 : vector<4x1xf32>
    %cst_24 = arith.constant 0.899999976 : f32
    %48 = vector.broadcast %cst_24 : f32 to vector<4x1xf32>
    %49 = arith.mulf %48, %32 : vector<4x1xf32>
    %cst_25 = arith.constant 1.000000e-01 : f32
    %50 = vector.broadcast %cst_25 : f32 to vector<4x1xf32>
    %51 = arith.mulf %50, %35 : vector<4x1xf32>
    %52 = arith.addf %49, %51 : vector<4x1xf32>
    %cst_26 = arith.constant 0.899999976 : f32
    %53 = vector.broadcast %cst_26 : f32 to vector<4x1xf32>
    %54 = arith.mulf %53, %33 : vector<4x1xf32>
    %cst_27 = arith.constant 1.000000e-01 : f32
    %55 = vector.broadcast %cst_27 : f32 to vector<4x1xf32>
    %56 = arith.mulf %55, %41 : vector<4x1xf32>
    %57 = arith.addf %54, %56 : vector<4x1xf32>
    %c0_28 = arith.constant 0 : index
    %c0_29 = arith.constant 0 : index
    %58 = vector.load %arg4[%c0_28, %c0_29] : memref<4x2xf32, #tpu.memory_space<vmem>>, vector<4x1xf32>
    tpu.vector_store %arg4[%c0_28, %c0_29], %52 {strides = array<i32>} : memref<4x2xf32, #tpu.memory_space<vmem>>, vector<4x1xf32>,
    %c0_30 = arith.constant 0 : index
    %c1_31 = arith.constant 1 : index
    %59 = vector.load %arg4[%c0_30, %c1_31] : memref<4x2xf32, #tpu.memory_space<vmem>>, vector<4x1xf32>
    tpu.vector_store %arg4[%c0_30, %c1_31], %57 {strides = array<i32>} : memref<4x2xf32, #tpu.memory_space<vmem>>, vector<4x1xf32>,
    %c0_32 = arith.constant 0 : index
    %c0_33 = arith.constant 0 : index
    %c0_34 = arith.constant 0 : index
    %60 = vector.load %arg1[%c0_32, %c0_33, %c0_34] : memref<2x4x256xf32, #tpu.memory_space<vmem>>, vector<1x4x128xf32>
    %61 = vector.shape_cast %60 : vector<1x4x128xf32> to vector<4x128xf32>
    %62 = vector.broadcast %45 : vector<4x1xf32> to vector<4x128xf32>
    %63 = arith.mulf %61, %62 : vector<4x128xf32>
    %64 = vector.broadcast %47 : vector<4x1xf32> to vector<4x128xf32>
    %65 = arith.addf %63, %64 : vector<4x128xf32>
    %c0_35 = arith.constant 0 : index
    %c0_36 = arith.constant 0 : index
    %c0_37 = arith.constant 0 : index
    %66 = vector.load %arg3[%c0_35, %c0_36, %c0_37] : memref<2x4x256xf32, #tpu.memory_space<vmem>>, vector<1x4x128xf32>
    %67 = vector.shape_cast %66 : vector<1x4x128xf32> to vector<4x128xf32>
    %68 = vector.shape_cast %65 : vector<4x128xf32> to vector<1x4x128xf32>
    tpu.vector_store %arg3[%c0_35, %c0_36, %c0_37], %68 {strides = array<i32>} : memref<2x4x256xf32, #tpu.memory_space<vmem>>, vector<1x4x128xf32>,
    %c0_38 = arith.constant 0 : index
    %c0_39 = arith.constant 0 : index
    %c128_40 = arith.constant 128 : index
    %69 = vector.load %arg1[%c0_38, %c0_39, %c128_40] : memref<2x4x256xf32, #tpu.memory_space<vmem>>, vector<1x4x128xf32>
    %70 = vector.shape_cast %69 : vector<1x4x128xf32> to vector<4x128xf32>
    %71 = vector.broadcast %45 : vector<4x1xf32> to vector<4x128xf32>
    %72 = arith.mulf %70, %71 : vector<4x128xf32>
    %73 = vector.broadcast %47 : vector<4x1xf32> to vector<4x128xf32>
    %74 = arith.addf %72, %73 : vector<4x128xf32>
    %c0_41 = arith.constant 0 : index
    %c0_42 = arith.constant 0 : index
    %c128_43 = arith.constant 128 : index
    %75 = vector.load %arg3[%c0_41, %c0_42, %c128_43] : memref<2x4x256xf32, #tpu.memory_space<vmem>>, vector<1x4x128xf32>
    %76 = vector.shape_cast %75 : vector<1x4x128xf32> to vector<4x128xf32>
    %77 = vector.shape_cast %74 : vector<4x128xf32> to vector<1x4x128xf32>
    tpu.vector_store %arg3[%c0_41, %c0_42, %c128_43], %77 {strides = array<i32>} : memref<2x4x256xf32, #tpu.memory_space<vmem>>, vector<1x4x128xf32>,
    %c1_44 = arith.constant 1 : index
    %c0_45 = arith.constant 0 : index
    %c0_46 = arith.constant 0 : index
    %78 = vector.load %arg1[%c1_44, %c0_45, %c0_46] : memref<2x4x256xf32, #tpu.memory_space<vmem>>, vector<1x4x128xf32>
    %79 = vector.shape_cast %78 : vector<1x4x128xf32> to vector<4x128xf32>
    %80 = vector.broadcast %45 : vector<4x1xf32> to vector<4x128xf32>
    %81 = arith.mulf %79, %80 : vector<4x128xf32>
    %82 = vector.broadcast %47 : vector<4x1xf32> to vector<4x128xf32>
    %83 = arith.addf %81, %82 : vector<4x128xf32>
    %c1_47 = arith.constant 1 : index
    %c0_48 = arith.constant 0 : index
    %c0_49 = arith.constant 0 : index
    %84 = vector.load %arg3[%c1_47, %c0_48, %c0_49] : memref<2x4x256xf32, #tpu.memory_space<vmem>>, vector<1x4x128xf32>
    %85 = vector.shape_cast %84 : vector<1x4x128xf32> to vector<4x128xf32>
    %86 = vector.shape_cast %83 : vector<4x128xf32> to vector<1x4x128xf32>
    tpu.vector_store %arg3[%c1_47, %c0_48, %c0_49], %86 {strides = array<i32>} : memref<2x4x256xf32, #tpu.memory_space<vmem>>, vector<1x4x128xf32>,
    %c1_50 = arith.constant 1 : index
    %c0_51 = arith.constant 0 : index
    %c128_52 = arith.constant 128 : index
    %87 = vector.load %arg1[%c1_50, %c0_51, %c128_52] : memref<2x4x256xf32, #tpu.memory_space<vmem>>, vector<1x4x128xf32>
    %88 = vector.shape_cast %87 : vector<1x4x128xf32> to vector<4x128xf32>
    %89 = vector.broadcast %45 : vector<4x1xf32> to vector<4x128xf32>
    %90 = arith.mulf %88, %89 : vector<4x128xf32>
    %91 = vector.broadcast %47 : vector<4x1xf32> to vector<4x128xf32>
    %92 = arith.addf %90, %91 : vector<4x128xf32>
    %c1_53 = arith.constant 1 : index
    %c0_54 = arith.constant 0 : index
    %c128_55 = arith.constant 128 : index
    %93 = vector.load %arg3[%c1_53, %c0_54, %c128_55] : memref<2x4x256xf32, #tpu.memory_space<vmem>>, vector<1x4x128xf32>
    %94 = vector.shape_cast %93 : vector<1x4x128xf32> to vector<4x128xf32>
    %95 = vector.shape_cast %92 : vector<4x128xf32> to vector<1x4x128xf32>
    tpu.vector_store %arg3[%c1_53, %c0_54, %c128_55], %95 {strides = array<i32>} : memref<2x4x256xf32, #tpu.memory_space<vmem>>, vector<1x4x128xf32>,
    return
  }
  func.func @transform_0(%arg0: i32) -> (i32, i32, i32) {
    %c0_i32 = arith.constant 0 : i32
    %c0_i32_0 = arith.constant 0 : i32
    %c0_i32_1 = arith.constant 0 : i32
    return %c0_i32, %arg0, %c0_i32_0 : i32, i32, i32
  }
  func.func @transform_1(%arg0: i32) -> (i32, i32) {
    %c0_i32 = arith.constant 0 : i32
    %c0_i32_0 = arith.constant 0 : i32
    return %arg0, %c0_i32 : i32, i32
  }
  func.func @transform_2(%arg0: i32) -> (i32, i32, i32) {
    %c0_i32 = arith.constant 0 : i32
    %c0_i32_0 = arith.constant 0 : i32
    %c0_i32_1 = arith.constant 0 : i32
    return %c0_i32, %arg0, %c0_i32_0 : i32, i32, i32
  }
  func.func @transform_3(%arg0: i32) -> (i32, i32) {
    %c0_i32 = arith.constant 0 : i32
    %c0_i32_0 = arith.constant 0 : i32
    return %arg0, %c0_i32 : i32, i32
  }
}

</mosaic_0001>

<llo_original>
// kernel: tpu_custom_call.1
$region0: #{tpu_custom_call.1}
  #allocation0 [shape = 'u32[]', space=smem, size = 0x4, offset = 0x4, fixed_abs, tag = 'smem constant byte address 0x4 - core index']
  #allocation1 [shape = 'u32[72,128]{1,0:T(1,128)}', space=vmem, size = 0x9000, scoped, tag = 'internal scratch']
  %s0 = inlined_call_operand.hbm [shape: f32[2,4,256], index: 0, kind: input, shape index: {}]
  %s1 = inlined_call_operand.hbm [shape: f32[4,4], index: 1, kind: input, shape index: {}]
  %s2 = inlined_call_operand.hbm [shape: f32[2,4,256], index: 2, kind: output, shape index: {0}]
  %s3 = inlined_call_operand.vmem [shape: f32[4,2], index: 3, kind: output, shape index: {1}]
  %4 = xla_tuple %s2, %s3
  %s5 = sld [smem:[#allocation0]]
  $region34: #{tpu_custom_call.1} parent=0
    _
  %s7 = ssub.s32 1, %s5
  %s8 = scalar_select 0, %s7, %s5
  $region1: #{tpu_custom_call.1} parent=0
    #allocation2 [shape = 'u8[8192]{0}', space=vmem, size = 0x2000, scoped, tag = 'input window, operand 0, single buffered']
    #allocation3 [shape = 's32[1]{0}', space=sflag, size = 0x4, scoped, tag = 'scoped memory for tpu_custom_call.1']
    #allocation4 [shape = 's32[1]{0}', space=sflag, size = 0x4, scoped, tag = 'scoped memory for tpu_custom_call.1']
    #allocation5 [shape = 'u8[2048]{0}', space=vmem, size = 0x800, scoped, tag = 'input window, operand 1, single buffered']
    #allocation6 [shape = 's32[1]{0}', space=sflag, size = 0x4, scoped, tag = 'scoped memory for tpu_custom_call.1']
    #allocation7 [shape = 'u8[8192]{0}', space=vmem, size = 0x2000, scoped, tag = 'output window, operand 0, single buffered']
    %9 = vsyncpa [#allocation3], 0
    %10 = vsyncpa [#allocation6], 0
    %11 = vsyncpa [#allocation4], 0
    // Predicated region
    $region2: #{tpu_custom_call.1} parent=1 // pred_check
      _
    $region3: #{tpu_custom_call.1} parent=1 // pred_check_branch
      %13 = sbr.rel (0) target = $region5
    $region4: #{tpu_custom_call.1} parent=1 // pred_region
      %15 = vsyncadd [#allocation3], 0
      %s16 = sshll.u32 %s0, 4
      %s17 = int_to_ptr.hbm [resolvable:$true] %s16
      %s18 = sshll.u32 [#allocation2], 4
      %s19 = int_to_ptr.vmem [resolvable:$true] %s18
      %24 = dma.hbm_to_vmem [thread:$0]  %s17, 256, %s19, [#allocation3], 128, 128, 8
    $region5: #{tpu_custom_call.1} parent=1 // pred_fallthru
      _
    // Predicated region
    $region6: #{tpu_custom_call.1} parent=1 // pred_check
      _
    $region7: #{tpu_custom_call.1} parent=1 // pred_check_branch
      %26 = sbr.rel (0) target = $region9
    $region8: #{tpu_custom_call.1} parent=1 // pred_region
      %28 = vsyncadd [#allocation6], 0
      %s30 = sshll.u32 %s1, 4
      %s31 = int_to_ptr.hbm [resolvable:$true] %s30
      %s32 = sshll.u32 [#allocation5], 4
      %s33 = int_to_ptr.vmem [resolvable:$true] %s32
      %35 = dma.hbm_to_vmem [thread:$0]  %s31, 64, %s33, [#allocation6]
    $region9: #{tpu_custom_call.1} parent=1 // pred_fallthru
      _
    // Predicated region
    $region10: #{tpu_custom_call.1} parent=1 // pred_check
      _
    $region11: #{tpu_custom_call.1} parent=1 // pred_check_branch
      %37 = sbr.rel (0) target = $region13
    $region12: #{tpu_custom_call.1} parent=1 // pred_region
      %39 = dma.done [#allocation3], 256
    $region13: #{tpu_custom_call.1} parent=1 // pred_fallthru
      _
    // Predicated region
    $region14: #{tpu_custom_call.1} parent=1 // pred_check
      _
    $region15: #{tpu_custom_call.1} parent=1 // pred_check_branch
      %41 = sbr.rel (0) target = $region17
    $region16: #{tpu_custom_call.1} parent=1 // pred_region
      %43 = dma.done [#allocation6], 64
    $region17: #{tpu_custom_call.1} parent=1 // pred_fallthru
      _
    %v44 = vld [vmem:[#allocation2] sm:$0xf]
    %v45 = vadd.f32 %v44, 0.0
    %v46 = vmul.f32 %v44, %v44
    %v47 = vadd.f32 %v46, 0.0
    %v48 = vld [vmem:[#allocation2 + $0x4] sm:$0xf]
    %v49 = vadd.f32 %v45, %v48
    %v50 = vmul.f32 %v48, %v48
    %v51 = vadd.f32 %v47, %v50
    %s52 = scalar_lea.vmem [#allocation2], 8
    %v53 = vld [vmem:[%s52] sm:$0xf]
    %v54 = vadd.f32 %v49, %v53
    %v55 = vmul.f32 %v53, %v53
    %v56 = vadd.f32 %v51, %v55
    %v57 = vld [vmem:[%s52 + $0x4] sm:$0xf]
    %v58 = vadd.f32 %v54, %v57
    %v59 = vmul.f32 %v57, %v57
    %v60 = vadd.f32 %v56, %v59
    %vm61 = vcmask 1043456
    %v62 = vsel %vm61, %v58, 0.0
    %63 = vadd.xlane.f32.xlu0 %v62
    %v64 = vpop.xlane.xlu0 %63
    %v65 = vadd.f32 %v64, 0.0
    %v66 = vsel %vm61, %v60, 0.0
    %67 = vadd.xlane.f32.xlu0 %v66
    %v68 = vpop.xlane.xlu0 %67
    %v69 = vadd.f32 %v68, 0.0
    %v70 = vld [vmem:[#allocation5] sm:$0xf]
    %v71 = vmul.f32 %v65, 0.001953125
    %v72 = vmul.f32 %v65, %v71
    %v73 = vsub.f32 %v69, %v72
    %v74 = vmul.f32 %v73, 0.001953125
    %v75 = vmul.f32 %v73, 0.0019569471
    %v76 = vadd.f32 %v74, 1e-05
    %v77 = vrsqrt.pop %v76
    %v78 = vmul.f32 %v77, %v76
    %v79 = vmul.f32 %v78, %v77
    %v80 = vmul.f32 0.5, %v79
    %v81 = vsub.f32 1.5, %v80
    %v82 = vmul.f32 %v77, %v81
    %vm83 = vweird.f32 %v76
    %vm84 = vweird.f32 %v77
    %vm85 = vmor %vm83, %vm84
    %v86 = vsel %vm85, %v77, %v82
    %v87 = vmul.f32 %v70, %v86
    %v88 = vmul.f32 %v71, %v87
    %90 = vrot.lane.b32.xlu0 %v88, 1
    %v91 = vpop.permute.xlu0 %90
    %v93 = vsub.f32 %v70, %v91
    %v94 = vmul.f32 %v70, 0.9
    %v95 = vmul.f32 %v71, 0.1
    %v96 = vadd.f32 %v94, %v95
    %v97 = vmul.f32 %v75, 0.1
    %v98 = vadd.f32 %v94, %v97
    %100 = vrot.lane.b32.xlu0 %v96, 126
    %v101 = vpop.permute.xlu0 %100
    %vm103 = vcmask 3072
    %104 = vst.msk [vmem:[%s3] sm:$0xf] %vm103, %v101
    %106 = vrot.lane.b32.xlu0 %v98, 126
    %v107 = vpop.permute.xlu0 %106
    %vm109 = vcmask 11272
    %110 = vst.msk [vmem:[%s3] sm:$0xf] %vm109, %v107
    %v111 = vld [vmem:[#allocation2] sm:$0xf]
    %113 = vset.pattern.permute.xlu0 0
    %114 = vperm.xlu0 %113, %v87
    %v115 = vpop.permute.xlu0 %114
    %v117 = vmul.f32 %v111, %v115
    %119 = vset.pattern.permute.xlu0 1
    %120 = vperm.xlu0 %119, %v93
    %v121 = vpop.permute.xlu0 %120
    %v123 = vadd.f32 %v117, %v121
    %124 = vst [vmem:[#allocation7] sm:$0xf] %v123
    %v125 = vld [vmem:[#allocation2 + $0x4] sm:$0xf]
    %v126 = vmul.f32 %v125, %v115
    %v127 = vadd.f32 %v126, %v121
    %128 = vst [vmem:[#allocation7 + $0x4] sm:$0xf] %v127
    %v129 = vld [vmem:[%s52] sm:$0xf]
    %v130 = vmul.f32 %v129, %v115
    %v131 = vadd.f32 %v130, %v121
    %s132 = scalar_lea.vmem [#allocation7], 8
    %133 = vst [vmem:[%s132] sm:$0xf] %v131
    %v134 = vld [vmem:[%s52 + $0x4] sm:$0xf]
    %v135 = vmul.f32 %v134, %v115
    %v136 = vadd.f32 %v135, %v121
    %137 = vst [vmem:[%s132 + $0x4] sm:$0xf] %v136
    // Predicated region
    $region18: #{tpu_custom_call.1} parent=1 // pred_check
      _
    $region19: #{tpu_custom_call.1} parent=1 // pred_check_branch
      %139 = sbr.rel (0) target = $region21
    $region20: #{tpu_custom_call.1} parent=1 // pred_region
      %141 = vsyncadd [#allocation4], 0
      %s142 = sshll.u32 [#allocation7], 4
      %s143 = int_to_ptr.vmem [resolvable:$true] %s142
      %s144 = sshll.u32 %s2, 4
      %s145 = int_to_ptr.hbm [resolvable:$true] %s144
      %150 = dma.vmem_to_hbm [thread:$0]  %s143, 256, %s145, [#allocation4], 128, 128, 8
    $region21: #{tpu_custom_call.1} parent=1 // pred_fallthru
      _
    // Predicated region
    $region22: #{tpu_custom_call.1} parent=1 // pred_check
      _
    $region23: #{tpu_custom_call.1} parent=1 // pred_check_branch
      %152 = sbr.rel (0) target = $region25
    $region24: #{tpu_custom_call.1} parent=1 // pred_region
      _
    $region25: #{tpu_custom_call.1} parent=1 // pred_fallthru
      _
    // Predicated region
    $region26: #{tpu_custom_call.1} parent=1 // pred_check
      _
    $region27: #{tpu_custom_call.1} parent=1 // pred_check_branch
      %154 = sbr.rel (0) target = $region29
    $region28: #{tpu_custom_call.1} parent=1 // pred_region
      %156 = dma.done [#allocation4], 256
    $region29: #{tpu_custom_call.1} parent=1 // pred_fallthru
      _
    // Predicated region
    $region30: #{tpu_custom_call.1} parent=1 // pred_check
      _
    $region31: #{tpu_custom_call.1} parent=1 // pred_check_branch
      %158 = sbr.rel (0) target = $region33
    $region32: #{tpu_custom_call.1} parent=1 // pred_region
      _
    $region33: #{tpu_custom_call.1} parent=1 // pred_fallthru
      _
    %159 = vsyncpa [#allocation3], 1
    %160 = vsyncpa [#allocation6], 1
    %161 = vsyncpa [#allocation4], 1

</llo_original>
